<compile_context>
chip_gen: v7x
topology: tpu7x:2x2x1
jax: 0.10.0
libtpu: 0.0.40
codegen_flags: <defaults>
</compile_context>

<pallas_src>
import functools

import jax
import jax.numpy as jnp
from jax.experimental import pallas as pl
from jax.experimental.pallas import tpu as pltpu


def _upsampler_kernel(x_ref, w_ref, b_ref, o_ref):
    """Fused GEMM (transposed layout) + bias (folded BN) + ReLU.

    x_ref: (1, Cin,   TM)    one image's pixels, M = H*W on the lane axis
    w_ref: (4*Cout, Cin)     BN-scaled packed transposed-conv weights (4 taps)
    b_ref: (4*Cout, 1)       folded BN bias (broadcast over lanes)
    o_ref: (1, 4*Cout, TM)   relu(bn(convT(x)))^T, M on the lane axis
    """
    y = jnp.dot(w_ref[...], x_ref[0], preferred_element_type=jnp.float32)
    y = y + b_ref[...]
    o_ref[0] = jnp.maximum(y, 0.0).astype(o_ref.dtype)


def _round_up(x, mult):
    return ((x + mult - 1) // mult) * mult


def _vmem_budget_and_limit():
    """Chip-aware (tile VMEM budget, scoped vmem_limit_bytes)."""
    cap = None
    try:
        cap = getattr(pltpu.get_tpu_info(), "vmem_capacity_bytes", None)
    except Exception:
        cap = None
    if cap is not None and cap >= 100 * 1024 * 1024:
        # v5e / v6e: 128 MiB physical VMEM -> allow big tiles.
        return 64 * 1024 * 1024, 96 * 1024 * 1024
    # v7x (64 MiB physical) or unknown chip: stay conservative.
    return 24 * 1024 * 1024, 32 * 1024 * 1024


def _choose_tile_m(n, cin, cout, hw, tile_m_cap, out_itemsize, vmem_budget):
    """Largest 128-multiple lane tile that fits VMEM and keeps >=4 grid steps."""
    hw128 = _round_up(hw, 128)
    # Double-buffered x tile + out tile (+ resident weight/bias, negligible).
    fixed = 2 * (4 * cout * cin * 4 + 4 * cout * 4)
    per_col = 2 * (cin * 4 + 4 * cout * out_itemsize)
    by_vmem = max(vmem_budget - fixed, 0) // max(per_col, 1)
    # >= 4 total grid steps when there is enough work: keeps per-core double
    # buffering alive when the parallel grid is sharded across 2 TCs (v7x).
    min_tiles_per_image = max(1, -(-4 // n))                 # ceil(4 / n)
    by_grid = hw128 // min_tiles_per_image
    tm = min(tile_m_cap, hw128, by_vmem, by_grid)
    return max(128, (tm // 128) * 128)


def upsampler_forward(x_nchw, weight, gamma, beta, running_mean, running_var,
                      eps=1e-5, tile_m=65536, out_dtype=jnp.float32):
    """Pallas implementation of UpSampler.forward (BatchNorm in eval mode).

    x_nchw: (N, Cin, H, W)    float32
    weight: (Cin, Cout, 2, 2) PyTorch ConvTranspose2d weight layout
    returns: (N, Cout, 2H, 2W) in `out_dtype`.

    Tip: out_dtype=jnp.bfloat16 cuts the dominant HBM writeback stream roughly
    in half for this memory-bound op; default stays float32 to match PyTorch.
    """
    n, cin, h, w = x_nchw.shape
    cout = weight.shape[1]
    hw = h * w
    out_itemsize = jnp.dtype(out_dtype).itemsize

    vmem_budget, vmem_limit = _vmem_budget_and_limit()
    tm = _choose_tile_m(n, cin, cout, hw, tile_m, out_itemsize, vmem_budget)

    # Free view (no HBM transpose / copy): columns of each image stay lane-dense.
    x_view = x_nchw.reshape(n, cin, hw)

    # Packed weights: row index = co*4 + kh*2 + kw, col index = ci.
    w_packed_t = jnp.transpose(weight, (1, 2, 3, 0)).reshape(4 * cout, cin)

    # Fold eval-mode BatchNorm into the weights / bias.
    scale = gamma / jnp.sqrt(running_var + eps)                     # (Cout,)
    bias = beta - running_mean * scale                              # (Cout,)
    w_scaled = (w_packed_t * jnp.repeat(scale, 4)[:, None]).astype(jnp.float32)
    bias_rows = jnp.repeat(bias, 4)[:, None].astype(jnp.float32)    # (4*Cout,1)

    grid = (n, pl.cdiv(hw, tm))
    flops = 2 * cin * 4 * cout * n * hw
    bytes_accessed = (n * cin * hw * x_nchw.dtype.itemsize
                      + 4 * cout * cin * 4 + 4 * cout * 4
                      + n * 4 * cout * hw * out_itemsize)

    out_t = pl.pallas_call(
        _upsampler_kernel,
        out_shape=jax.ShapeDtypeStruct((n, 4 * cout, hw), out_dtype),
        grid_spec=pltpu.PrefetchScalarGridSpec(
            num_scalar_prefetch=0,
            grid=grid,
            in_specs=[
                pl.BlockSpec((1, cin, tm), lambda b, i: (b, 0, i)),     # x view
                pl.BlockSpec((4 * cout, cin), lambda b, i: (0, 0)),     # weights
                pl.BlockSpec((4 * cout, 1), lambda b, i: (0, 0)),       # bias
            ],
            out_specs=pl.BlockSpec((1, 4 * cout, tm), lambda b, i: (b, 0, i)),
        ),
        compiler_params=pltpu.CompilerParams(
            dimension_semantics=("parallel", "parallel"),
            vmem_limit_bytes=vmem_limit,
        ),
        cost_estimate=pl.CostEstimate(
            flops=flops, transcendentals=0, bytes_accessed=bytes_accessed),
    )(x_view, w_scaled, bias_rows)

    # ---- scatter the 4 taps back into the 2x-upsampled NCHW grid -----------
    # TODO(synk): when 2*W % 128 == 0 this de-interleave (an extra HBM round
    # trip of the output) can be fused into the kernel by tiling M in whole
    # input rows and doing the (4*Cout, th*W) -> (Cout, 2*th, 2*W) shuffle in
    # VMEM (XLU slot is idle); kept outside the call so small-W shapes stay
    # lane-dense and robust.
    y = out_t.reshape(n, cout, 2, 2, h, w)           # (n, co, kh, kw, i, j)
    y = jnp.transpose(y, (0, 1, 4, 2, 5, 3))         # (n, co, i, kh, j, kw)
    return y.reshape(n, cout, 2 * h, 2 * w)


def _reference(x_nchw, weight, gamma, beta, running_mean, running_var, eps=1e-5):
    """Pure-JAX reference of the same forward pass (independent code path)."""
    n, cin, h, w = x_nchw.shape
    cout = weight.shape[1]
    y = jnp.einsum('nchw,cokl->nohkwl', x_nchw, weight)            # (N,Co,H,2,W,2)
    y = y.reshape(n, cout, 2 * h, 2 * w)
    scale = gamma / jnp.sqrt(running_var + eps)
    bias = beta - running_mean * scale
    y = y * scale[None, :, None, None] + bias[None, :, None, None]
    return jnp.maximum(y, 0.0)


if __name__ == "__main__":
    key = jax.random.PRNGKey(0)
    k_x, k_w, k_g, k_b, k_rm, k_rv = jax.random.split(key, 6)

    N, CIN, COUT, H, W = 2, 4, 8, 16, 16

    x = jax.random.normal(k_x, (N, CIN, H, W), dtype=jnp.float32)
    # ConvTranspose2d weight: (in_channels, out_channels, kH, kW)
    weight = 0.1 * jax.random.normal(k_w, (CIN, COUT, 2, 2), dtype=jnp.float32)
    gamma = 1.0 + 0.1 * jax.random.normal(k_g, (COUT,), dtype=jnp.float32)
    beta = 0.1 * jax.random.normal(k_b, (COUT,), dtype=jnp.float32)
    running_mean = 0.1 * jax.random.normal(k_rm, (COUT,), dtype=jnp.float32)
    running_var = jnp.abs(1.0 + 0.1 * jax.random.normal(k_rv, (COUT,),
                                                        dtype=jnp.float32))

    fwd = jax.jit(functools.partial(upsampler_forward, eps=1e-5))
    out = jax.block_until_ready(
        fwd(x, weight, gamma, beta, running_mean, running_var))
    ref = _reference(x, weight, gamma, beta, running_mean, running_var)
    assert out.shape == (N, COUT, 2 * H, 2 * W), out.shape
    assert jnp.allclose(out, ref, atol=1e-5, rtol=1e-5), \
        float(jnp.max(jnp.abs(out - ref)))

    # Ragged-M path: H*W not a multiple of 128 exercises the masked edge-block
    # store (no HBM-side padding or slicing anywhere in the wrapper).
    H2, W2 = 10, 13
    x2 = jax.random.normal(k_x, (N, CIN, H2, W2), dtype=jnp.float32)
    out2 = jax.block_until_ready(
        jax.jit(functools.partial(upsampler_forward, eps=1e-5))(
            x2, weight, gamma, beta, running_mean, running_var))
    ref2 = _reference(x2, weight, gamma, beta, running_mean, running_var)
    assert out2.shape == (N, COUT, 2 * H2, 2 * W2), out2.shape
    assert jnp.allclose(out2, ref2, atol=1e-5, rtol=1e-5), \
        float(jnp.max(jnp.abs(out2 - ref2)))

    print("KERNEL_OK")
</pallas_src>

<mosaic_0001>
module attributes {stable_mosaic.version = 11 : i64} {
  func.func @_upsampler_kernel(%arg0: i32, %arg1: i32, %arg2: memref<1x4x128xf32, #tpu.memory_space<vmem>>, %arg3: memref<32x4xf32, #tpu.memory_space<vmem>>, %arg4: memref<32x1xf32, #tpu.memory_space<vmem>>, %arg5: memref<1x32x128xf32, #tpu.memory_space<vmem>>) attributes {dimension_semantics = [#tpu.dimension_semantics<parallel>, #tpu.dimension_semantics<parallel>], iteration_bounds = array<i64: 2, 2>, scalar_prefetch = 0 : i64, scratch_operands = 0 : i64, tpu.core_type = #tpu.core_type<tc>, window_params = [{transform_indices = @transform_0, window_bounds = array<i64: 1, 4, 128>}, {pipeline_mode = #tpu.pipeline_mode<synchronous>, transform_indices = @transform_1, window_bounds = array<i64: 32, 4>}, {pipeline_mode = #tpu.pipeline_mode<synchronous>, transform_indices = @transform_2, window_bounds = array<i64: 32, 1>}, {transform_indices = @transform_3, window_bounds = array<i64: 1, 32, 128>}]} {
    %c0 = arith.constant 0 : index
    %c0_0 = arith.constant 0 : index
    %0 = vector.load %arg3[%c0, %c0_0] : memref<32x4xf32, #tpu.memory_space<vmem>>, vector<32x4xf32>
    %c0_1 = arith.constant 0 : index
    %c0_2 = arith.constant 0 : index
    %c0_3 = arith.constant 0 : index
    %1 = vector.load %arg2[%c0_1, %c0_2, %c0_3] : memref<1x4x128xf32, #tpu.memory_space<vmem>>, vector<1x4x128xf32>
    %2 = vector.shape_cast %1 : vector<1x4x128xf32> to vector<4x128xf32>
    %cst = arith.constant dense<0.000000e+00> : vector<32x128xf32>
    %3 = tpu.matmul %0, %2, %cst {dimension_numbers = #tpu.dot_dimension_numbers<[1], [0], [0], [1], [0, 0, 1, 1], [], []>} : vector<32x4xf32>, vector<4x128xf32>, vector<32x128xf32> -> vector<32x128xf32>
    %c0_4 = arith.constant 0 : index
    %c0_5 = arith.constant 0 : index
    %4 = vector.load %arg4[%c0_4, %c0_5] : memref<32x1xf32, #tpu.memory_space<vmem>>, vector<32x1xf32>
    %5 = vector.broadcast %4 : vector<32x1xf32> to vector<32x128xf32>
    %6 = arith.addf %3, %5 : vector<32x128xf32>
    %cst_6 = arith.constant 0.000000e+00 : f32
    %7 = vector.broadcast %cst_6 : f32 to vector<32x128xf32>
    %8 = arith.maximumf %6, %7 : vector<32x128xf32>
    %c0_7 = arith.constant 0 : index
    %c0_8 = arith.constant 0 : index
    %c0_9 = arith.constant 0 : index
    %9 = vector.load %arg5[%c0_7, %c0_8, %c0_9] : memref<1x32x128xf32, #tpu.memory_space<vmem>>, vector<1x32x128xf32>
    %10 = vector.shape_cast %9 : vector<1x32x128xf32> to vector<32x128xf32>
    %11 = vector.shape_cast %8 : vector<32x128xf32> to vector<1x32x128xf32>
    tpu.vector_store %arg5[%c0_7, %c0_8, %c0_9], %11 {strides = array<i32>} : memref<1x32x128xf32, #tpu.memory_space<vmem>>, vector<1x32x128xf32>,
    return
  }
  func.func @transform_0(%arg0: i32, %arg1: i32) -> (i32, i32, i32) {
    %c0_i32 = arith.constant 0 : i32
    %c0_i32_0 = arith.constant 0 : i32
    return %arg0, %c0_i32, %arg1 : i32, i32, i32
  }
  func.func @transform_1(%arg0: i32, %arg1: i32) -> (i32, i32) {
    %c0_i32 = arith.constant 0 : i32
    %c0_i32_0 = arith.constant 0 : i32
    %c0_i32_1 = arith.constant 0 : i32
    return %c0_i32, %c0_i32_0 : i32, i32
  }
  func.func @transform_2(%arg0: i32, %arg1: i32) -> (i32, i32) {
    %c0_i32 = arith.constant 0 : i32
    %c0_i32_0 = arith.constant 0 : i32
    %c0_i32_1 = arith.constant 0 : i32
    return %c0_i32, %c0_i32_0 : i32, i32
  }
  func.func @transform_3(%arg0: i32, %arg1: i32) -> (i32, i32, i32) {
    %c0_i32 = arith.constant 0 : i32
    %c0_i32_0 = arith.constant 0 : i32
    return %arg0, %c0_i32, %arg1 : i32, i32, i32
  }
}

</mosaic_0001>

<llo_original>
// kernel: mul.7
$region0: #{mul.7}
  %s0 = inlined_call_operand.vmem [shape: f32[8,4], index: 0, kind: input, shape index: {}]
  %s1 = inlined_call_operand.vmem [shape: f32[32], index: 1, kind: output, shape index: {}]
  $region1: #{mul.7} parent=0
    #allocation0 [shape = 'u8[4096]{0}', space=vmem, size = 0x1000, scoped, tag = 'scoped mem for output reshape']
    %v2 = vld [vmem:[%s0] sm:$0x1]
    %vm3 = vcmask 31744
    %4 = vst.msk [vmem:[#allocation0] sm:$0x1] %vm3, %v2
    %s5 = scalar_lea.vmem %s0, 7
    %v6 = vld [vmem:[%s5] sm:$0x1]
    %7 = vrot.lane.b32.xlu0 %v6, 28
    %v8 = vpop.permute.xlu0 %7
    %vm9 = vcmask 261344
    %10 = vst.msk [vmem:[#allocation0] sm:$0x1] %vm9, %v8
    %s11 = scalar_lea.vmem %s0, 6
    %v12 = vld [vmem:[%s11] sm:$0x1]
    %13 = vrot.lane.b32.xlu0 %v12, 24
    %v14 = vpop.permute.xlu0 %13
    %vm15 = vcmask 228544
    %16 = vst.msk [vmem:[#allocation0] sm:$0x1] %vm15, %v14
    %s17 = scalar_lea.vmem %s0, 5
    %v18 = vld [vmem:[%s17] sm:$0x1]
    %19 = vrot.lane.b32.xlu0 %v18, 20
    %v20 = vpop.permute.xlu0 %19
    %vm21 = vcmask 195744
    %22 = vst.msk [vmem:[#allocation0] sm:$0x1] %vm21, %v20
    %s23 = scalar_lea.vmem %s0, 4
    %v24 = vld [vmem:[%s23] sm:$0x1]
    %25 = vrot.lane.b32.xlu0 %v24, 16
    %v26 = vpop.permute.xlu0 %25
    %vm27 = vcmask 162944
    %28 = vst.msk [vmem:[#allocation0] sm:$0x1] %vm27, %v26
    %s29 = scalar_lea.vmem %s0, 3
    %v30 = vld [vmem:[%s29] sm:$0x1]
    %31 = vrot.lane.b32.xlu0 %v30, 12
    %v32 = vpop.permute.xlu0 %31
    %vm33 = vcmask 130144
    %34 = vst.msk [vmem:[#allocation0] sm:$0x1] %vm33, %v32
    %s35 = scalar_lea.vmem %s0, 2
    %v36 = vld [vmem:[%s35] sm:$0x1]
    %37 = vrot.lane.b32.xlu0 %v36, 8
    %v38 = vpop.permute.xlu0 %37
    %vm39 = vcmask 97344
    %40 = vst.msk [vmem:[#allocation0] sm:$0x1] %vm39, %v38
    %s41 = scalar_lea.vmem %s0, 1
    %v42 = vld [vmem:[%s41] sm:$0x1]
    %43 = vrot.lane.b32.xlu0 %v42, 4
    %v44 = vpop.permute.xlu0 %43
    %vm45 = vcmask 64544
    %46 = vst.msk [vmem:[#allocation0] sm:$0x1] %vm45, %v44
    %s48 = sshllo.u32 0, 1
    %v50 = vld [vmem:[#allocation0] sm:%s48]
    %s51 = sshllo.u32 0, 1
    %52 = vst [vmem:[%s1] sm:%s51] %v50

// kernel: upsampler_forward.1
$region0: #{upsampler_forward.1}
  #allocation0 [shape = 'u32[]', space=smem, size = 0x4, offset = 0x4, fixed_abs, tag = 'smem constant byte address 0x4 - core index']
  #allocation1 [shape = 'u32[144,128]{1,0:T(1,128)}', space=vmem, size = 0x12000, scoped, tag = 'internal scratch']
  %s0 = inlined_call_operand.vmem [shape: f32[2,4,256], index: 0, kind: input, shape index: {}]
  %s1 = inlined_call_operand.vmem [shape: f32[32,4], index: 1, kind: input, shape index: {}]
  %s2 = inlined_call_operand.vmem [shape: f32[32,1], index: 2, kind: input, shape index: {}]
  %s3 = inlined_call_operand.vmem [shape: f32[2,32,256], index: 3, kind: output, shape index: {}]
  %s4 = sld [smem:[#allocation0]]
  $region79: #{upsampler_forward.1} parent=0
    _
  %s6 = ssub.s32 1, %s4
  %s7 = scalar_select 0, %s6, %s4
  $region1: #{upsampler_forward.1} parent=0
    #allocation2 [shape = 'u8[32768]{0}', space=vmem, size = 0x8000, scoped, tag = 'output window, operand 0']
    loop: start=0, step=1, limit=6
    $region2: #{upsampler_forward.1} parent=1 // loop_pre_header
      _
    $region3: #{upsampler_forward.1} parent=1 // loop_header
      %s9 = sphi 0, %s13
      %p10 = scmp.ge.s32.totalorder %s9, 6
      %s16 = sphi 0, %s28
      %s17 = sphi 0, %s24
      %s18 = sphi 0, %s16
      %s19 = sphi 0, %s17
      %s20 = sphi 0, %s18
      %s21 = sphi 0, %s19
      %s33 = sphi 0, %s35
      %s36 = sphi 0, %s33
      %s37 = sphi 0, %s36
      %s53 = sphi 0, %s37
      %s57 = sphi 0, %s57
      %s59 = sphi 0, %s57
      %s60 = sphi 0, %s59
      %s74 = sphi 0, %s60
      %s78 = sphi 0, %s78
      %s80 = sphi 0, %s78
      %s81 = sphi 0, %s80
      %s95 = sphi 0, %s81
      %s103 = sphi 0, %s105
      %s106 = sphi 0, %s103
      %s107 = sphi 0, %s106
      %s123 = sphi 0, %s107
    $region4: #{upsampler_forward.1} parent=1 // loop_header_branch
      %12 = sbr.rel (%p10) target = $region8
    $region5: #{upsampler_forward.1} parent=1 // loop_body
      %s14 = ssub.s32 %s9, 1
      %s15 = ssub.s32 %s9, 2
      %s22 = sadd.s32 1, %s17
      %p23 = scmp.ge.s32.totalorder %s22, 2
      %s24 = scalar_select %p23, 0, %s22
      %s25 = sadd.s32 1, %s16
      %s26 = scalar_select %p23, %s25, %s16
      %p27 = scmp.ge.s32.totalorder %s26, 2
      %s28 = scalar_select %p27, 0, %s26
      %s29 = ssub.s32 %s16, %s28
      %s30 = ssub.s32 %s17, %s24
      %s31 = sor.u32 %s29, %s30
      %p32 = scmp.eq.s32.totalorder %s31, 0
      %s34 = sadd.s32 %s33, 1
      %s35 = scalar_select %p32, %s33, %s34
      %p38 = pneg %p32
      %p39 = scmp.eq.s32.totalorder %s9, 3
      %p40 = por %p38, %p39
      %p41 = scmp.ne.s32.totalorder %s33, %s36
      %p42 = scmp.eq.s32.totalorder %s9, 0
      %p43 = por %p41, %p42
      %p44 = scmp.ne.s32.totalorder %s33, %s36
      %p45 = scmp.eq.s32.totalorder %s14, 3
      %p46 = por %p44, %p45
      %p47 = scmp.ne.s32.totalorder %s36, %s37
      %p48 = scmp.eq.s32.totalorder %s14, 0
      %p49 = por %p47, %p48
      %p50 = scmp.ne.s32.totalorder %s36, %s37
      %p51 = scmp.eq.s32.totalorder %s15, 3
      %p52 = por %p50, %p51
      %p54 = scmp.ne.s32.totalorder %s37, %s53
      %p55 = scmp.eq.s32.totalorder %s15, 0
      %p56 = por %p54, %p55
      %s58 = sadd.s32 %s57, 1
      %p61 = scmp.eq.s32.totalorder %s9, 3
      %p62 = scmp.ne.s32.totalorder %s57, %s59
      %p63 = scmp.eq.s32.totalorder %s9, 0
      %p64 = por %p62, %p63
      %p65 = scmp.ne.s32.totalorder %s57, %s59
      %p66 = scmp.eq.s32.totalorder %s14, 3
      %p67 = por %p65, %p66
      %p68 = scmp.ne.s32.totalorder %s59, %s60
      %p69 = scmp.eq.s32.totalorder %s14, 0
      %p70 = por %p68, %p69
      %p71 = scmp.ne.s32.totalorder %s59, %s60
      %p72 = scmp.eq.s32.totalorder %s15, 3
      %p73 = por %p71, %p72
      %p75 = scmp.ne.s32.totalorder %s60, %s74
      %p76 = scmp.eq.s32.totalorder %s15, 0
      %p77 = por %p75, %p76
      %s79 = sadd.s32 %s78, 1
      %p82 = scmp.eq.s32.totalorder %s9, 3
      %p83 = scmp.ne.s32.totalorder %s78, %s80
      %p84 = scmp.eq.s32.totalorder %s9, 0
      %p85 = por %p83, %p84
      %p86 = scmp.ne.s32.totalorder %s78, %s80
      %p87 = scmp.eq.s32.totalorder %s14, 3
      %p88 = por %p86, %p87
      %p89 = scmp.ne.s32.totalorder %s80, %s81
      %p90 = scmp.eq.s32.totalorder %s14, 0
      %p91 = por %p89, %p90
      %p92 = scmp.ne.s32.totalorder %s80, %s81
      %p93 = scmp.eq.s32.totalorder %s15, 3
      %p94 = por %p92, %p93
      %p96 = scmp.ne.s32.totalorder %s81, %s95
      %p97 = scmp.eq.s32.totalorder %s15, 0
      %p98 = por %p96, %p97
      %s99 = ssub.s32 %s16, %s28
      %s100 = ssub.s32 %s17, %s24
      %s101 = sor.u32 %s99, %s100
      %p102 = scmp.eq.s32.totalorder %s101, 0
      %s104 = sadd.s32 %s103, 1
      %s105 = scalar_select %p102, %s103, %s104
      %p108 = pneg %p102
      %p109 = scmp.eq.s32.totalorder %s9, 3
      %p110 = por %p108, %p109
      %p111 = scmp.ne.s32.totalorder %s103, %s106
      %p112 = scmp.eq.s32.totalorder %s9, 0
      %p113 = por %p111, %p112
      %p114 = scmp.ne.s32.totalorder %s103, %s106
      %p115 = scmp.eq.s32.totalorder %s14, 3
      %p116 = por %p114, %p115
      %p117 = scmp.ne.s32.totalorder %s106, %s107
      %p118 = scmp.eq.s32.totalorder %s14, 0
      %p119 = por %p117, %p118
      %p120 = scmp.ne.s32.totalorder %s106, %s107
      %p121 = scmp.eq.s32.totalorder %s15, 3
      %p122 = por %p120, %p121
      %p124 = scmp.ne.s32.totalorder %s107, %s123
      %p125 = scmp.eq.s32.totalorder %s15, 0
      %p126 = por %p124, %p125
      %p127 = scmp.le.s32.totalorder 1, %s9
      %p128 = scmp.lt.s32.totalorder %s9, 5
      %p129 = pnand %p127, %p128
      %p130 = pneg %p129
      // Predicated region
      $region9: #{upsampler_forward.1} parent=5 // pred_check
        _
      $region10: #{upsampler_forward.1} parent=5 // pred_check_branch
        %132 = sbr.rel (%p129) target = $region12
      $region11: #{upsampler_forward.1} parent=5 // pred_region
        %s133 = ssub.s32 %s9, 1
        // Predicated region
        $region13: #{upsampler_forward.1} parent=11 // pred_check
          %p134 = pneg %p70
        $region14: #{upsampler_forward.1} parent=11 // pred_check_branch
          %136 = sbr.rel (%p134) target = $region16
        $region15: #{upsampler_forward.1} parent=11 // pred_region
          _
        $region16: #{upsampler_forward.1} parent=11 // pred_fallthru
          _
        // Predicated region
        $region17: #{upsampler_forward.1} parent=11 // pred_check
          %p137 = pneg %p91
        $region18: #{upsampler_forward.1} parent=11 // pred_check_branch
          %139 = sbr.rel (%p137) target = $region20
        $region19: #{upsampler_forward.1} parent=11 // pred_region
          _
        $region20: #{upsampler_forward.1} parent=11 // pred_fallthru
          _
      $region12: #{upsampler_forward.1} parent=5 // pred_fallthru
        _
      %p140 = scmp.lt.s32.totalorder %s9, 4
      // Predicated region
      $region21: #{upsampler_forward.1} parent=5 // pred_check
        %p141 = pneg %p140
      $region22: #{upsampler_forward.1} parent=5 // pred_check_branch
        %143 = sbr.rel (%p141) target = $region24
      $region23: #{upsampler_forward.1} parent=5 // pred_region
        // Predicated region
        $region25: #{upsampler_forward.1} parent=23 // pred_check
          %p144 = pneg %p43
        $region26: #{upsampler_forward.1} parent=23 // pred_check_branch
          %146 = sbr.rel (%p144) target = $region28
        $region27: #{upsampler_forward.1} parent=23 // pred_region
          %p147 = scmp.lt.s32.totalorder %s16, 1
          %s148 = scalar_select %p147, %s16, 1
          %p149 = scmp.lt.s32.totalorder %s17, 1
          %s150 = scalar_select %p149, %s17, 1
          %s151 = smul.addr %s148, 2
          %s152 = sadd.s32 %s150, %s151
          %s153 = smul.addr %s152, 4
          %s154 = scalar_lea.vmem %s0, %s153
        $region28: #{upsampler_forward.1} parent=23 // pred_fallthru
          _
      $region24: #{upsampler_forward.1} parent=5 // pred_fallthru
        _
      %p155 = scmp.le.s32.totalorder 1, %s9
      %p156 = scmp.lt.s32.totalorder %s9, 5
      %p157 = pnand %p155, %p156
      %p158 = pneg %p157
      // Predicated region
      $region29: #{upsampler_forward.1} parent=5 // pred_check
        _
      $region30: #{upsampler_forward.1} parent=5 // pred_check_branch
        %160 = sbr.rel (%p157) target = $region32
      $region31: #{upsampler_forward.1} parent=5 // pred_region
        %s161 = ssub.s32 %s9, 1
        %p162 = scmp.lt.s32.totalorder %s18, 1
        %s163 = scalar_select %p162, %s18, 1
        %p164 = scmp.lt.s32.totalorder %s19, 1
        %s165 = scalar_select %p164, %s19, 1
        %s166 = smul.addr %s163, 2
        %s167 = sadd.s32 %s165, %s166
        %s168 = smul.addr %s167, 4
        %s169 = scalar_lea.vmem %s0, %s168
        %p170 = pneg %p49
        %p171 = pneg %p46
        %p172 = pneg %p70
        %p173 = pneg %p67
        %p174 = pneg %p91
        %p175 = pneg %p88
        %p176 = pneg %p119
        %p177 = pneg %p116
        %s178 = sand.u32 %s106, 1
        %s179 = sand.u32 %s106, 1
        %s180 = smul.addr %s179, 32
        %s181 = scalar_lea.vmem [#allocation2], %s180
        %p182 = scmp.lt.s32.totalorder %s18, 1
        %s183 = scalar_select %p182, %s18, 1
        %p184 = scmp.lt.s32.totalorder %s19, 1
        %s185 = scalar_select %p184, %s19, 1
        %s186 = smul.addr %s183, 2
        %s187 = sadd.s32 %s185, %s186
        %s188 = smul.addr %s187, 4
        %s189 = scalar_lea.vmem %s0, %s188
        %v190 = vld [vmem:[%s1] sm:$0xff]
        %v191 = vld [vmem:[%s1 + $0x8] sm:$0xff]
        %v192 = vld [vmem:[%s1 + $0x10] sm:$0xff]
        %v193 = vld [vmem:[%s1 + $0x18] sm:$0xff]
        %v194 = vld [vmem:[%s189] sm:$0xf]
        %v195 = vld [vmem:[%s2] sm:$0xff]
        %v196 = vld [vmem:[%s2 + $0x8] sm:$0xff]
        %v197 = vld [vmem:[%s2 + $0x10] sm:$0xff]
        %v198 = vld [vmem:[%s2 + $0x18] sm:$0xff]
        %200 = vset.pattern.permute.xlu0 0
        %201 = vperm.xlu0 %200, %v195
        %v202 = vpop.permute.xlu0 %201
        %205 = vset.pattern.permute.xlu0 0
        %206 = vperm.xlu0 %205, %v196
        %v207 = vpop.permute.xlu0 %206
        %210 = vset.pattern.permute.xlu0 0
        %211 = vperm.xlu0 %210, %v197
        %v212 = vpop.permute.xlu0 %211
        %215 = vset.pattern.permute.xlu0 0
        %216 = vperm.xlu0 %215, %v198
        %v217 = vpop.permute.xlu0 %216
        %vm219 = vcmask 31744
        %v221 = vsel %vm219, %v190, 0
        %v224 = vsel %vm219, %v191, 0
        %v227 = vsel %vm219, %v192, 0
        %v230 = vsel %vm219, %v193, 0
        %vm232 = vcmask 1043456
        %v234 = vsel %vm232, %v194, 0
        %236 = vmatprep.subr.mxu0 0.0
        %237 = vmatpush1.msra.mxu0 %v234
        %238 = vmatprep.subr.mxu0 0.0
        %239 = vmatpush1.msra.mxu0 0.0
        %240 = vmatprep.subr.mxu0 0.0
        %241 = vmatpush1.msra.mxu0 0.0
        %242 = vmatprep.subr.mxu0 0.0
        %243 = vmatpush1.msra.mxu0 0.0
        %244 = vmatprep.subr.mxu0 0.0
        %245 = vmatpush1.msra.mxu0 0.0
        %246 = vmatprep.subr.mxu0 0.0
        %247 = vmatpush1.msra.mxu0 0.0
        %248 = vmatprep.subr.mxu0 0.0
        %249 = vmatpush1.msra.mxu0 0.0
        %250 = vmatprep.subr.mxu0 0.0
        %251 = vmatpush1.msra.mxu0 0.0
        %252 = vmatprep.subr.mxu0 0.0
        %253 = vmatpush1.msra.mxu0 0.0
        %254 = vmatprep.subr.mxu0 0.0
        %255 = vmatpush1.msra.mxu0 0.0
        %256 = vmatprep.subr.mxu0 0.0
        %257 = vmatpush1.msra.mxu0 0.0
        %258 = vmatprep.subr.mxu0 0.0
        %259 = vmatpush1.msra.mxu0 0.0
        %260 = vmatprep.subr.mxu0 0.0
        %261 = vmatpush1.msra.mxu0 0.0
        %262 = vmatprep.subr.mxu0 0.0
        %263 = vmatpush1.msra.mxu0 0.0
        %264 = vmatprep.subr.mxu0 0.0
        %265 = vmatpush1.msra.mxu0 0.0
        %266 = vmatprep.subr.mxu0 0.0
        %267 = vmatpush1.msra.mxu0 0.0
        %268 = vmatprep.subr.mxu0 0.0
        %269 = vmatpush1.msra.mxu0 0.0
        %270 = vmatprep.subr.mxu0 0.0
        %271 = vmatpush1.msra.mxu0 0.0
        %272 = vmatprep.subr.mxu0 0.0
        %273 = vmatpush1.msra.mxu0 0.0
        %274 = vmatprep.subr.mxu0 0.0
        %275 = vmatpush1.msra.mxu0 0.0
        %276 = vmatprep.subr.mxu0 0.0
        %277 = vmatpush1.msra.mxu0 0.0
        %278 = vmatprep.subr.mxu0 0.0
        %279 = vmatpush1.msra.mxu0 0.0
        %280 = vmatprep.subr.mxu0 0.0
        %281 = vmatpush1.msra.mxu0 0.0
        %282 = vmatprep.subr.mxu0 0.0
        %283 = vmatpush1.msra.mxu0 0.0
        %284 = vmatprep.subr.mxu0 0.0
        %285 = vmatpush1.msra.mxu0 0.0
        %286 = vmatprep.subr.mxu0 0.0
        %287 = vmatpush1.msra.mxu0 0.0
        %288 = vmatprep.subr.mxu0 0.0
        %289 = vmatpush1.msra.mxu0 0.0
        %290 = vmatprep.subr.mxu0 0.0
        %291 = vmatpush1.msra.mxu0 0.0
        %292 = vmatprep.subr.mxu0 0.0
        %293 = vmatpush1.msra.mxu0 0.0
        %294 = vmatprep.subr.mxu0 0.0
        %295 = vmatpush1.msra.mxu0 0.0
        %296 = vmatprep.subr.mxu0 0.0
        %297 = vmatpush1.msra.mxu0 0.0
        %298 = vmatprep.subr.mxu0 0.0
        %299 = vmatpush1.msra.mxu0 0.0
        %300 = vmatprep.mubr.f32.mxu0 0.0
        %301 = vmatmul.mubr.f32.gmra.mrb[0].mxu0 %v221
        %v302 = vpop.f32.mrb[0].mxu0
        %v303 = vadd.f32 %v202, %v302
        %v304 = vpop.f32.mrb[0].mxu0
        %305 = vmatprep.mubr.f32.mxu0 0.0
        %306 = vmatmul.mubr.f32.gmra.mrb[0].mxu0 %v224
        %v307 = vpop.f32.mrb[0].mxu0
        %v308 = vadd.f32 %v207, %v307
        %v309 = vpop.f32.mrb[0].mxu0
        %310 = vmatprep.mubr.f32.mxu0 0.0
        %311 = vmatmul.mubr.f32.gmra.mrb[0].mxu0 %v227
        %v312 = vpop.f32.mrb[0].mxu0
        %v313 = vadd.f32 %v212, %v312
        %v314 = vpop.f32.mrb[0].mxu0
        %315 = vmatprep.mubr.f32.mxu0 0.0
        %316 = vmatmul.mubr.f32.gmra.mrb[0].mxu0 %v230
        %v317 = vpop.f32.mrb[0].mxu0
        %v318 = vadd.f32 %v217, %v317
        %v319 = vpop.f32.mrb[0].mxu0
        %320 = vdwg.mxu0
        %v321 = vmax.f32 %v303, 0.0
        %v322 = vmax.f32 %v308, 0.0
        %v323 = vmax.f32 %v313, 0.0
        %v324 = vmax.f32 %v318, 0.0
        %325 = vst [vmem:[%s181] sm:$0xff] %v321
        %326 = vst [vmem:[%s181 + $0x8] sm:$0xff] %v322
        %327 = vst [vmem:[%s181 + $0x10] sm:$0xff] %v323
        %328 = vst [vmem:[%s181 + $0x18] sm:$0xff] %v324
        %s329 = sand.u32 %s106, 1
        %s330 = sand.u32 %s106, 1
        %s331 = smul.addr %s330, 32
        %s332 = scalar_lea.vmem [#allocation2], %s331
        // Predicated region
        $region33: #{upsampler_forward.1} parent=31 // pred_check
          %p333 = pneg %p116
        $region34: #{upsampler_forward.1} parent=31 // pred_check_branch
          %335 = sbr.rel (%p333) target = $region36
        $region35: #{upsampler_forward.1} parent=31 // pred_region
          %s336 = smul.addr %s18, 8
          %s337 = sadd.s32 %s19, %s336
          %s338 = smul.addr %s337, 8
          %s339 = scalar_lea.vmem %s3, %s338
          // Predicated region
          $region37: #{upsampler_forward.1} parent=35 // pred_check
            _
          $region38: #{upsampler_forward.1} parent=35 // pred_check_branch
            %341 = sbr.rel (0) target = $region40
          $region39: #{upsampler_forward.1} parent=35 // pred_region
            // Predicated region
            $region41: #{upsampler_forward.1} parent=39 // pred_check
              _
            $region42: #{upsampler_forward.1} parent=39 // pred_check_branch
              %343 = sbr.rel (0) target = $region44
            $region43: #{upsampler_forward.1} parent=39 // pred_region
              // Predicated region
              $region56: #{upsampler_forward.1} parent=43 // pred_check
                _
              $region57: #{upsampler_forward.1} parent=43 // pred_check_branch
                %364 = sbr.rel (0) target = $region59
              $region58: #{upsampler_forward.1} parent=43 // pred_region
                loop: start=0, step=1, limit=1
                $region60: #{upsampler_forward.1} parent=58 // loop_pre_header
                  _
                $region61: #{upsampler_forward.1} parent=58 // loop_header
                  %s366 = sphi 0, %s370
                  %p367 = scmp.ge.s32.totalorder %s366, 1
                  %s371 = sphi %s332, %s332
                  %s372 = sphi %s339, %s339
                $region62: #{upsampler_forward.1} parent=58 // loop_header_branch
                  %369 = sbr.rel (%p367) target = $region66
                $region63: #{upsampler_forward.1} parent=58 // loop_body
                  %v373 = vld [vmem:[%s371] sm:$0xff]
                  %374 = vst [vmem:[%s372] sm:$0xff] %v373
                  %v375 = vld [vmem:[%s371 + $0x8] sm:$0xff]
                  %376 = vst [vmem:[%s372 + $0x10] sm:$0xff] %v375
                  %v377 = vld [vmem:[%s371 + $0x10] sm:$0xff]
                  %378 = vst [vmem:[%s372 + $0x20] sm:$0xff] %v377
                  %v379 = vld [vmem:[%s371 + $0x18] sm:$0xff]
                  %380 = vst [vmem:[%s372 + $0x30] sm:$0xff] %v379
                $region64: #{upsampler_forward.1} parent=58 // loop_footer
                  %s370 = sadd.s32 1, %s366
                $region65: #{upsampler_forward.1} parent=58 // loop_footer_branch
                  %365 = sbr.rel target = $region61
                $region66: #{upsampler_forward.1} parent=58 // loop_exit
                  _
              $region59: #{upsampler_forward.1} parent=43 // pred_fallthru
                _
              // Predicated region
              $region67: #{upsampler_forward.1} parent=43 // pred_check
                _
              $region68: #{upsampler_forward.1} parent=43 // pred_check_branch
                %382 = sbr.rel target = $region70
              $region69: #{upsampler_forward.1} parent=43 // pred_region
                _
              $region70: #{upsampler_forward.1} parent=43 // pred_fallthru
                _
            $region44: #{upsampler_forward.1} parent=39 // pred_fallthru
              _
            // Predicated region
            $region45: #{upsampler_forward.1} parent=39 // pred_check
              _
            $region46: #{upsampler_forward.1} parent=39 // pred_check_branch
              %345 = sbr.rel target = $region48
            $region47: #{upsampler_forward.1} parent=39 // pred_region
              loop: start=0, step=1, limit=1
              $region49: #{upsampler_forward.1} parent=47 // loop_pre_header
                _
              $region50: #{upsampler_forward.1} parent=47 // loop_header
                %s348 = sphi 0, %s352
                %p349 = scmp.ge.s32.totalorder %s348, 1
                %s353 = sphi %s332, %s332
                %s354 = sphi %s339, %s339
              $region51: #{upsampler_forward.1} parent=47 // loop_header_branch
                %351 = sbr.rel (%p349) target = $region55
              $region52: #{upsampler_forward.1} parent=47 // loop_body
                %v355 = vld [vmem:[%s353] sm:$0xff]
                %356 = vst [vmem:[%s354] sm:$0xff] %v355
                %v357 = vld [vmem:[%s353 + $0x8] sm:$0xff]
                %358 = vst [vmem:[%s354 + $0x10] sm:$0xff] %v357
                %v359 = vld [vmem:[%s353 + $0x10] sm:$0xff]
                %360 = vst [vmem:[%s354 + $0x20] sm:$0xff] %v359
                %v361 = vld [vmem:[%s353 + $0x18] sm:$0xff]
                %362 = vst [vmem:[%s354 + $0x30] sm:$0xff] %v361
              $region53: #{upsampler_forward.1} parent=47 // loop_footer
                %s352 = sadd.s32 1, %s348
              $region54: #{upsampler_forward.1} parent=47 // loop_footer_branch
                %347 = sbr.rel target = $region50
              $region55: #{upsampler_forward.1} parent=47 // loop_exit
                _
            $region48: #{upsampler_forward.1} parent=39 // pred_fallthru
              _
          $region40: #{upsampler_forward.1} parent=35 // pred_fallthru
            _
          %383 = vnop
        $region36: #{upsampler_forward.1} parent=31 // pred_fallthru
          _
      $region32: #{upsampler_forward.1} parent=5 // pred_fallthru
        _
      %p384 = scmp.le.s32.totalorder 2, %s9
      // Predicated region
      $region71: #{upsampler_forward.1} parent=5 // pred_check
        %p385 = pneg %p384
      $region72: #{upsampler_forward.1} parent=5 // pred_check_branch
        %387 = sbr.rel (%p385) target = $region74
      $region73: #{upsampler_forward.1} parent=5 // pred_region
        %s388 = ssub.s32 %s9, 2
        // Predicated region
        $region75: #{upsampler_forward.1} parent=73 // pred_check
          %p389 = pneg %p122
        $region76: #{upsampler_forward.1} parent=73 // pred_check_branch
          %391 = sbr.rel (%p389) target = $region78
        $region77: #{upsampler_forward.1} parent=73 // pred_region
          %s392 = sand.u32 %s107, 1
          %s393 = sand.u32 %s107, 1
          %s394 = smul.addr %s393, 32
          %s395 = scalar_lea.vmem [#allocation2], %s394
        $region78: #{upsampler_forward.1} parent=73 // pred_fallthru
          _
      $region74: #{upsampler_forward.1} parent=5 // pred_fallthru
        _
    $region6: #{upsampler_forward.1} parent=1 // loop_footer
      %s13 = sadd.s32 1, %s9
    $region7: #{upsampler_forward.1} parent=1 // loop_footer_branch
      %8 = sbr.rel target = $region3
    $region8: #{upsampler_forward.1} parent=1 // loop_exit
      _

</llo_original>
